<compile_context>
chip_gen: v7x
topology: tpu7x:2x2x1
jax: 0.10.0
libtpu: 0.0.40
codegen_flags: <defaults>
</compile_context>

<pallas_src>
import functools

import jax
import jax.numpy as jnp
from jax.experimental import pallas as pl
from jax.experimental.pallas import tpu as pltpu


# ----------------------------- config ---------------------------------------
STATE_DIM = 8        # config.state_dim
N_AGENTS = 4         # config.n_agents
EMBED_DIM = 32       # config.embed_dim
HYPERNET_EMBED = 32  # config.hypernet_embed (hypernet_layers == 2 -> MLP)


def _round_up(x, m):
    return (x + m - 1) // m * m


# ----------------------------- kernel ---------------------------------------
def qmix_kernel(
    s_ref, qs_ref,
    w1cat_ref, b1cat_ref,   # fused stage-1 hypernets : (2H+2E, S), (2H+2E, 1)
    w2a_ref, b2a_ref,       # hyper_w_1 second layer  : (A*E, H),   (A*E, 1)
    w2b_ref, b2b_ref,       # fused [hyper_w_final l2 ; V l2] block-diag
    out_ref,
    *, n_agents, embed_dim, hyper_embed,
):
    f32 = jnp.float32
    H, E = hyper_embed, embed_dim

    s = s_ref[...].astype(f32)     # (S, TN)   rows on lanes
    qs = qs_ref[...].astype(f32)   # (A, TN)

    # ---- stage 1: all four first-layer hypernets in ONE lane/row-full matmul
    out1 = jnp.dot(w1cat_ref[...], s, preferred_element_type=f32) + b1cat_ref[...]
    act = jnp.maximum(out1[:2 * H + E, :], 0.0)
    h = act[:H, :]              # relu(hyper_w_1 layer-1)          (H, TN)
    hfvh = act[H:, :]           # relu([hyper_w_final l1 ; V l1])  (H+E, TN)
    b1 = out1[2 * H + E:, :]    # hyper_b_1(states), NO relu       (E, TN)

    # ---- stage 2a: |W1| first mixing-layer weights (already 128 rows) ------
    w1 = jnp.abs(jnp.dot(w2a_ref[...], h, preferred_element_type=f32)
                 + b2a_ref[...])                                    # (A*E, TN)

    # ---- stage 2b: fused block-diagonal [hyper_w_final l2 ; V l2] ----------
    out2 = jnp.dot(w2b_ref[...], hfvh, preferred_element_type=f32) + b2b_ref[...]
    w_final = jnp.abs(out2[:E, :])    # (E, TN)  |w_final|
    v = out2[E:E + 1, :]              # (1, TN)  state value V(s)

    # ---- monotonic mixing: hidden = elu(bmm(agent_qs, W1) + b1) ------------
    hidden_pre = b1
    for a in range(n_agents):  # static, tiny trip count
        hidden_pre = hidden_pre + qs[a:a + 1, :] * w1[a * E:(a + 1) * E, :]
    # ELU (alpha=1); exp only sees the non-positive branch values.
    hidden = jnp.where(hidden_pre > 0, hidden_pre,
                       jnp.exp(jnp.minimum(hidden_pre, 0.0)) - 1.0)

    # ---- q_tot = hidden . |w_final| + v  -> lane-dense (1, TN) row ---------
    y = jnp.sum(hidden * w_final, axis=0, keepdims=True) + v
    out_ref[...] = y.astype(out_ref.dtype)


# ----------------------------- param packing --------------------------------
def _pack_params(params, *, A, E, H):
    """Pre-transpose / fuse the (tiny) hypernet parameters into 6 slabs."""
    f32 = jnp.float32
    # stage 1: concat all four S->width first layers -> one S->(2H+2E) matmul
    w1cat = jnp.concatenate(
        [params["hw1_w1"], params["hwf_w1"], params["v1_w"], params["hb1_w"]],
        axis=1).T.astype(f32)                                    # (2H+2E, S)
    b1cat = jnp.concatenate(
        [params["hw1_b1"], params["hwf_b1"], params["v1_b"], params["hb1_b"]],
        axis=1).T.astype(f32)                                    # (2H+2E, 1)
    # stage 2a: hyper_w_1 second layer (A*E output rows, already full)
    w2a = params["hw1_w2"].T.astype(f32)                         # (A*E, H)
    b2a = params["hw1_b2"].T.astype(f32)                         # (A*E, 1)
    # stage 2b: block-diagonal fusion of hyper_w_final l2 (H->E) and V l2 (E->1)
    rows2 = _round_up(E + 1, 8)
    w2b = jnp.zeros((rows2, H + E), f32)
    w2b = w2b.at[:E, :H].set(params["hwf_w2"].T)
    w2b = w2b.at[E, H:].set(params["v2_w"][:, 0])
    b2b = jnp.zeros((rows2, 1), f32)
    b2b = b2b.at[:E, 0].set(params["hwf_b2"][0])
    b2b = b2b.at[E, 0].set(params["v2_b"][0, 0])
    return [w1cat, b1cat, w2a, b2a, w2b, b2b]


# ----------------------------- wrapper ---------------------------------------
def qmixer_forward(agent_qs, states, params, *, max_row_tile=1024):
    """agent_qs: [B, T, A], states: [B, T, S] -> q_tot: [B, T, 1]"""
    B, T, A = agent_qs.shape
    S = states.shape[-1]
    E, H = EMBED_DIM, HYPERNET_EMBED
    assert E % 8 == 0 and H % 8 == 0

    N = B * T
    # Big row tile (amortizes per-step overhead, fills MXU M dim); cap at 1024
    # which fits comfortably in VMEM on every generation incl. v7x (64 MiB).
    row_tile = min(max_row_tile, _round_up(N, 128))
    n_pad = _round_up(N, row_tile)

    states_2d = states.reshape(N, S)
    qs_2d = agent_qs.reshape(N, A)
    if n_pad != N:
        states_2d = jnp.pad(states_2d, ((0, n_pad - N), (0, 0)))
        qs_2d = jnp.pad(qs_2d, ((0, n_pad - N), (0, 0)))
    # Feature-major layout (rows on lanes): all in-kernel slices become
    # sublane-aligned and q_tot comes out lane-dense. No dtype upcast here.
    states_t = states_2d.T   # (S, n_pad)
    qs_t = qs_2d.T           # (A, n_pad)

    packed = _pack_params(params, A=A, E=E, H=H)
    rows2 = packed[4].shape[0]

    def full_spec(p):
        # params are tiny: load whole array, same block every grid step
        return pl.BlockSpec(p.shape, lambda i: (0, 0))

    kernel = functools.partial(qmix_kernel, n_agents=A, embed_dim=E,
                               hyper_embed=H)

    flops_per_row = (2 * S * (2 * H + 2 * E) + 2 * H * (A * E)
                     + 2 * (H + E) * rows2 + 2 * A * E + 2 * E)
    param_bytes = int(sum(p.size for p in packed)) * 4
    cost = pl.CostEstimate(
        flops=int(n_pad) * flops_per_row,
        transcendentals=int(n_pad) * E,
        bytes_accessed=int(n_pad) * (S + A) * states_t.dtype.itemsize
        + int(n_pad) * 4 + param_bytes,
    )

    out = pl.pallas_call(
        kernel,
        out_shape=jax.ShapeDtypeStruct((1, n_pad), jnp.float32),
        grid_spec=pltpu.PrefetchScalarGridSpec(
            num_scalar_prefetch=0,
            grid=(n_pad // row_tile,),
            in_specs=[
                pl.BlockSpec((S, row_tile), lambda i: (0, i)),
                pl.BlockSpec((A, row_tile), lambda i: (0, i)),
            ] + [full_spec(p) for p in packed],
            out_specs=pl.BlockSpec((1, row_tile), lambda i: (0, i)),
        ),
        compiler_params=pltpu.CompilerParams(
            dimension_semantics=("parallel",),       # v7x: shard rows over 2 TCs
            vmem_limit_bytes=32 * 1024 * 1024,       # safe on v5e/v6e/v7x
        ),
        cost_estimate=cost,
    )(states_t, qs_t, *packed)

    return out[0, :N].reshape(B, T, 1)


# ----------------------------- param init ------------------------------------
def init_params(key, state_dim, n_agents, embed_dim, hyper_embed):
    """Deterministic init mimicking nn.Linear default (uniform +/- 1/sqrt(fan_in)).
    Weights stored as (in, out); biases as (1, out) slabs."""
    def linear(k, fan_in, fan_out):
        k1, k2 = jax.random.split(k)
        bound = 1.0 / (fan_in ** 0.5)
        w = jax.random.uniform(k1, (fan_in, fan_out), jnp.float32, -bound, bound)
        b = jax.random.uniform(k2, (1, fan_out), jnp.float32, -bound, bound)
        return w, b

    keys = jax.random.split(key, 7)
    p = {}
    # hyper_w_1: S -> H -> A*E
    p["hw1_w1"], p["hw1_b1"] = linear(keys[0], state_dim, hyper_embed)
    p["hw1_w2"], p["hw1_b2"] = linear(keys[1], hyper_embed, n_agents * embed_dim)
    # hyper_b_1: S -> E
    p["hb1_w"], p["hb1_b"] = linear(keys[2], state_dim, embed_dim)
    # hyper_w_final: S -> H -> E
    p["hwf_w1"], p["hwf_b1"] = linear(keys[3], state_dim, hyper_embed)
    p["hwf_w2"], p["hwf_b2"] = linear(keys[4], hyper_embed, embed_dim)
    # V: S -> E -> 1
    p["v1_w"], p["v1_b"] = linear(keys[5], state_dim, embed_dim)
    p["v2_w"], p["v2_b"] = linear(keys[6], embed_dim, 1)
    return p


# ----------------------------- pure-JAX reference -----------------------------
def qmixer_reference(agent_qs, states, params):
    B, T, A = agent_qs.shape
    S = states.shape[-1]
    E = EMBED_DIM
    s = states.reshape(-1, S).astype(jnp.float32)
    qs = agent_qs.reshape(-1, 1, A).astype(jnp.float32)

    h = jnp.maximum(s @ params["hw1_w1"] + params["hw1_b1"], 0.0)
    w1 = jnp.abs(h @ params["hw1_w2"] + params["hw1_b2"]).reshape(-1, A, E)
    b1 = (s @ params["hb1_w"] + params["hb1_b"]).reshape(-1, 1, E)
    hidden = jax.nn.elu(jnp.einsum("bia,bae->bie", qs, w1) + b1)

    hf = jnp.maximum(s @ params["hwf_w1"] + params["hwf_b1"], 0.0)
    wf = jnp.abs(hf @ params["hwf_w2"] + params["hwf_b2"]).reshape(-1, E, 1)
    vh = jnp.maximum(s @ params["v1_w"] + params["v1_b"], 0.0)
    v = (vh @ params["v2_w"] + params["v2_b"]).reshape(-1, 1, 1)
    y = jnp.einsum("bie,beo->bio", hidden, wf) + v
    return y.reshape(B, -1, 1)


# ----------------------------- main -------------------------------------------
if __name__ == "__main__":
    B, T = 2, 8  # batch (games), episode length
    key = jax.random.PRNGKey(0)
    k_params, k_qs, k_states = jax.random.split(key, 3)

    params = init_params(k_params, STATE_DIM, N_AGENTS, EMBED_DIM, HYPERNET_EMBED)
    agent_qs = jax.random.normal(k_qs, (B, T, N_AGENTS), jnp.float32)
    states = jax.random.normal(k_states, (B, T, STATE_DIM), jnp.float32)

    q_tot = qmixer_forward(agent_qs, states, params)
    q_tot = jax.block_until_ready(q_tot)

    q_ref = qmixer_reference(agent_qs, states, params)
    assert q_tot.shape == (B, T, 1)
    assert jnp.allclose(q_tot, q_ref, rtol=1e-4, atol=1e-4), "mismatch vs reference"

    print("KERNEL_OK")
</pallas_src>

<mosaic_0001>
module attributes {stable_mosaic.version = 11 : i64} {
  func.func @qmix_kernel(%arg0: i32, %arg1: memref<8x128xf32, #tpu.memory_space<vmem>>, %arg2: memref<4x128xf32, #tpu.memory_space<vmem>>, %arg3: memref<128x8xf32, #tpu.memory_space<vmem>>, %arg4: memref<128x1xf32, #tpu.memory_space<vmem>>, %arg5: memref<128x32xf32, #tpu.memory_space<vmem>>, %arg6: memref<128x1xf32, #tpu.memory_space<vmem>>, %arg7: memref<40x64xf32, #tpu.memory_space<vmem>>, %arg8: memref<40x1xf32, #tpu.memory_space<vmem>>, %arg9: memref<1x128xf32, #tpu.memory_space<vmem>>) attributes {dimension_semantics = [#tpu.dimension_semantics<parallel>], iteration_bounds = array<i64: 1>, scalar_prefetch = 0 : i64, scratch_operands = 0 : i64, tpu.core_type = #tpu.core_type<tc>, window_params = [{transform_indices = @transform_0, window_bounds = array<i64: 8, 128>}, {transform_indices = @transform_1, window_bounds = array<i64: 4, 128>}, {pipeline_mode = #tpu.pipeline_mode<synchronous>, transform_indices = @transform_2, window_bounds = array<i64: 128, 8>}, {pipeline_mode = #tpu.pipeline_mode<synchronous>, transform_indices = @transform_3, window_bounds = array<i64: 128, 1>}, {pipeline_mode = #tpu.pipeline_mode<synchronous>, transform_indices = @transform_4, window_bounds = array<i64: 128, 32>}, {pipeline_mode = #tpu.pipeline_mode<synchronous>, transform_indices = @transform_5, window_bounds = array<i64: 128, 1>}, {pipeline_mode = #tpu.pipeline_mode<synchronous>, transform_indices = @transform_6, window_bounds = array<i64: 40, 64>}, {pipeline_mode = #tpu.pipeline_mode<synchronous>, transform_indices = @transform_7, window_bounds = array<i64: 40, 1>}, {transform_indices = @transform_8, window_bounds = array<i64: 1, 128>}]} {
    %c0 = arith.constant 0 : index
    %c0_0 = arith.constant 0 : index
    %0 = vector.load %arg1[%c0, %c0_0] : memref<8x128xf32, #tpu.memory_space<vmem>>, vector<8x128xf32>
    %c0_1 = arith.constant 0 : index
    %c0_2 = arith.constant 0 : index
    %1 = vector.load %arg2[%c0_1, %c0_2] : memref<4x128xf32, #tpu.memory_space<vmem>>, vector<4x128xf32>
    %c0_3 = arith.constant 0 : index
    %c0_4 = arith.constant 0 : index
    %2 = vector.load %arg3[%c0_3, %c0_4] : memref<128x8xf32, #tpu.memory_space<vmem>>, vector<128x8xf32>
    %cst = arith.constant dense<0.000000e+00> : vector<128x128xf32>
    %3 = tpu.matmul %2, %0, %cst {dimension_numbers = #tpu.dot_dimension_numbers<[1], [0], [0], [1], [0, 0, 1, 1], [], []>} : vector<128x8xf32>, vector<8x128xf32>, vector<128x128xf32> -> vector<128x128xf32>
    %c0_5 = arith.constant 0 : index
    %c0_6 = arith.constant 0 : index
    %4 = vector.load %arg4[%c0_5, %c0_6] : memref<128x1xf32, #tpu.memory_space<vmem>>, vector<128x1xf32>
    %5 = vector.broadcast %4 : vector<128x1xf32> to vector<128x128xf32>
    %6 = arith.addf %3, %5 : vector<128x128xf32>
    %7 = vector.extract_strided_slice %6 {offsets = [0, 0], sizes = [96, 128], strides = [1, 1]} : vector<128x128xf32> to vector<96x128xf32>
    %cst_7 = arith.constant 0.000000e+00 : f32
    %8 = vector.broadcast %cst_7 : f32 to vector<96x128xf32>
    %9 = arith.maximumf %7, %8 : vector<96x128xf32>
    %10 = vector.extract_strided_slice %9 {offsets = [0, 0], sizes = [32, 128], strides = [1, 1]} : vector<96x128xf32> to vector<32x128xf32>
    %11 = vector.extract_strided_slice %9 {offsets = [32, 0], sizes = [64, 128], strides = [1, 1]} : vector<96x128xf32> to vector<64x128xf32>
    %12 = vector.extract_strided_slice %6 {offsets = [96, 0], sizes = [32, 128], strides = [1, 1]} : vector<128x128xf32> to vector<32x128xf32>
    %c0_8 = arith.constant 0 : index
    %c0_9 = arith.constant 0 : index
    %13 = vector.load %arg5[%c0_8, %c0_9] : memref<128x32xf32, #tpu.memory_space<vmem>>, vector<128x32xf32>
    %cst_10 = arith.constant dense<0.000000e+00> : vector<128x128xf32>
    %14 = tpu.matmul %13, %10, %cst_10 {dimension_numbers = #tpu.dot_dimension_numbers<[1], [0], [0], [1], [0, 0, 1, 1], [], []>} : vector<128x32xf32>, vector<32x128xf32>, vector<128x128xf32> -> vector<128x128xf32>
    %c0_11 = arith.constant 0 : index
    %c0_12 = arith.constant 0 : index
    %15 = vector.load %arg6[%c0_11, %c0_12] : memref<128x1xf32, #tpu.memory_space<vmem>>, vector<128x1xf32>
    %16 = vector.broadcast %15 : vector<128x1xf32> to vector<128x128xf32>
    %17 = arith.addf %14, %16 : vector<128x128xf32>
    %18 = math.absf %17 : vector<128x128xf32>
    %c0_13 = arith.constant 0 : index
    %c0_14 = arith.constant 0 : index
    %19 = vector.load %arg7[%c0_13, %c0_14] : memref<40x64xf32, #tpu.memory_space<vmem>>, vector<40x64xf32>
    %cst_15 = arith.constant dense<0.000000e+00> : vector<40x128xf32>
    %20 = tpu.matmul %19, %11, %cst_15 {dimension_numbers = #tpu.dot_dimension_numbers<[1], [0], [0], [1], [0, 0, 1, 1], [], []>} : vector<40x64xf32>, vector<64x128xf32>, vector<40x128xf32> -> vector<40x128xf32>
    %c0_16 = arith.constant 0 : index
    %c0_17 = arith.constant 0 : index
    %21 = vector.load %arg8[%c0_16, %c0_17] : memref<40x1xf32, #tpu.memory_space<vmem>>, vector<40x1xf32>
    %22 = vector.broadcast %21 : vector<40x1xf32> to vector<40x128xf32>
    %23 = arith.addf %20, %22 : vector<40x128xf32>
    %24 = vector.extract_strided_slice %23 {offsets = [0, 0], sizes = [32, 128], strides = [1, 1]} : vector<40x128xf32> to vector<32x128xf32>
    %25 = math.absf %24 : vector<32x128xf32>
    %26 = vector.extract_strided_slice %23 {offsets = [32, 0], sizes = [1, 128], strides = [1, 1]} : vector<40x128xf32> to vector<1x128xf32>
    %27 = vector.extract_strided_slice %1 {offsets = [0, 0], sizes = [1, 128], strides = [1, 1]} : vector<4x128xf32> to vector<1x128xf32>
    %28 = vector.extract_strided_slice %18 {offsets = [0, 0], sizes = [32, 128], strides = [1, 1]} : vector<128x128xf32> to vector<32x128xf32>
    %29 = vector.broadcast %27 : vector<1x128xf32> to vector<32x128xf32>
    %30 = arith.mulf %29, %28 : vector<32x128xf32>
    %31 = arith.addf %12, %30 : vector<32x128xf32>
    %32 = vector.extract_strided_slice %1 {offsets = [1, 0], sizes = [1, 128], strides = [1, 1]} : vector<4x128xf32> to vector<1x128xf32>
    %33 = vector.extract_strided_slice %18 {offsets = [32, 0], sizes = [32, 128], strides = [1, 1]} : vector<128x128xf32> to vector<32x128xf32>
    %34 = vector.broadcast %32 : vector<1x128xf32> to vector<32x128xf32>
    %35 = arith.mulf %34, %33 : vector<32x128xf32>
    %36 = arith.addf %31, %35 : vector<32x128xf32>
    %37 = vector.extract_strided_slice %1 {offsets = [2, 0], sizes = [1, 128], strides = [1, 1]} : vector<4x128xf32> to vector<1x128xf32>
    %38 = vector.extract_strided_slice %18 {offsets = [64, 0], sizes = [32, 128], strides = [1, 1]} : vector<128x128xf32> to vector<32x128xf32>
    %39 = vector.broadcast %37 : vector<1x128xf32> to vector<32x128xf32>
    %40 = arith.mulf %39, %38 : vector<32x128xf32>
    %41 = arith.addf %36, %40 : vector<32x128xf32>
    %42 = vector.extract_strided_slice %1 {offsets = [3, 0], sizes = [1, 128], strides = [1, 1]} : vector<4x128xf32> to vector<1x128xf32>
    %43 = vector.extract_strided_slice %18 {offsets = [96, 0], sizes = [32, 128], strides = [1, 1]} : vector<128x128xf32> to vector<32x128xf32>
    %44 = vector.broadcast %42 : vector<1x128xf32> to vector<32x128xf32>
    %45 = arith.mulf %44, %43 : vector<32x128xf32>
    %46 = arith.addf %41, %45 : vector<32x128xf32>
    %cst_18 = arith.constant 0.000000e+00 : f32
    %47 = vector.broadcast %cst_18 : f32 to vector<32x128xf32>
    %48 = arith.cmpf ogt, %46, %47 : vector<32x128xf32>
    %cst_19 = arith.constant 0.000000e+00 : f32
    %49 = vector.broadcast %cst_19 : f32 to vector<32x128xf32>
    %50 = arith.minimumf %46, %49 : vector<32x128xf32>
    %51 = math.exp %50 : vector<32x128xf32>
    %cst_20 = arith.constant 1.000000e+00 : f32
    %52 = vector.broadcast %cst_20 : f32 to vector<32x128xf32>
    %53 = arith.subf %51, %52 : vector<32x128xf32>
    %54 = arith.select %48, %46, %53 : vector<32x128xi1>, vector<32x128xf32>
    %55 = arith.mulf %54, %25 : vector<32x128xf32>
    %cst_21 = arith.constant dense<0.000000e+00> : vector<128xf32>
    %56 = vector.multi_reduction <add>, %55, %cst_21 [0] : vector<32x128xf32> to vector<128xf32>
    %57 = vector.shape_cast %56 : vector<128xf32> to vector<1x128xf32>
    %58 = arith.addf %57, %26 : vector<1x128xf32>
    %c0_22 = arith.constant 0 : index
    %c0_23 = arith.constant 0 : index
    %59 = vector.load %arg9[%c0_22, %c0_23] : memref<1x128xf32, #tpu.memory_space<vmem>>, vector<1x128xf32>
    tpu.vector_store %arg9[%c0_22, %c0_23], %58 {strides = array<i32>} : memref<1x128xf32, #tpu.memory_space<vmem>>, vector<1x128xf32>,
    return
  }
  func.func @transform_0(%arg0: i32) -> (i32, i32) {
    %c0_i32 = arith.constant 0 : i32
    %c0_i32_0 = arith.constant 0 : i32
    return %c0_i32, %arg0 : i32, i32
  }
  func.func @transform_1(%arg0: i32) -> (i32, i32) {
    %c0_i32 = arith.constant 0 : i32
    %c0_i32_0 = arith.constant 0 : i32
    return %c0_i32, %arg0 : i32, i32
  }
  func.func @transform_2(%arg0: i32) -> (i32, i32) {
    %c0_i32 = arith.constant 0 : i32
    %c0_i32_0 = arith.constant 0 : i32
    %c0_i32_1 = arith.constant 0 : i32
    return %c0_i32, %c0_i32_0 : i32, i32
  }
  func.func @transform_3(%arg0: i32) -> (i32, i32) {
    %c0_i32 = arith.constant 0 : i32
    %c0_i32_0 = arith.constant 0 : i32
    %c0_i32_1 = arith.constant 0 : i32
    return %c0_i32, %c0_i32_0 : i32, i32
  }
  func.func @transform_4(%arg0: i32) -> (i32, i32) {
    %c0_i32 = arith.constant 0 : i32
    %c0_i32_0 = arith.constant 0 : i32
    %c0_i32_1 = arith.constant 0 : i32
    return %c0_i32, %c0_i32_0 : i32, i32
  }
  func.func @transform_5(%arg0: i32) -> (i32, i32) {
    %c0_i32 = arith.constant 0 : i32
    %c0_i32_0 = arith.constant 0 : i32
    %c0_i32_1 = arith.constant 0 : i32
    return %c0_i32, %c0_i32_0 : i32, i32
  }
  func.func @transform_6(%arg0: i32) -> (i32, i32) {
    %c0_i32 = arith.constant 0 : i32
    %c0_i32_0 = arith.constant 0 : i32
    %c0_i32_1 = arith.constant 0 : i32
    return %c0_i32, %c0_i32_0 : i32, i32
  }
  func.func @transform_7(%arg0: i32) -> (i32, i32) {
    %c0_i32 = arith.constant 0 : i32
    %c0_i32_0 = arith.constant 0 : i32
    %c0_i32_1 = arith.constant 0 : i32
    return %c0_i32, %c0_i32_0 : i32, i32
  }
  func.func @transform_8(%arg0: i32) -> (i32, i32) {
    %c0_i32 = arith.constant 0 : i32
    %c0_i32_0 = arith.constant 0 : i32
    return %c0_i32, %arg0 : i32, i32
  }
}

</mosaic_0001>

<llo_original>
// kernel: tpu_custom_call.1
$region0: #{tpu_custom_call.1}
  #allocation0 [shape = 'u32[]', space=smem, size = 0x4, offset = 0x4, fixed_abs, tag = 'smem constant byte address 0x4 - core index']
  #allocation1 [shape = 'u32[144,128]{1,0:T(1,128)}', space=vmem, size = 0x12000, scoped, tag = 'internal scratch']
  %s0 = inlined_call_operand.vmem [shape: f32[8,128], index: 0, kind: input, shape index: {}]
  %s1 = inlined_call_operand.vmem [shape: f32[4,128], index: 1, kind: input, shape index: {}]
  %s2 = inlined_call_operand.vmem [shape: f32[128,8], index: 2, kind: input, shape index: {}]
  %s3 = inlined_call_operand.vmem [shape: f32[128,1], index: 3, kind: input, shape index: {}]
  %s4 = inlined_call_operand.vmem [shape: f32[128,32], index: 4, kind: input, shape index: {}]
  %s5 = inlined_call_operand.vmem [shape: f32[128,1], index: 5, kind: input, shape index: {}]
  %s6 = inlined_call_operand.vmem [shape: f32[40,64], index: 6, kind: input, shape index: {}]
  %s7 = inlined_call_operand.vmem [shape: f32[40,1], index: 7, kind: input, shape index: {}]
  %s8 = inlined_call_operand.hbm [shape: f32[1,128], index: 8, kind: output, shape index: {}]
  %s9 = sld [smem:[#allocation0]]
  $region42: #{tpu_custom_call.1} parent=0
    _
  %s11 = ssub.s32 1, %s9
  %s12 = scalar_select 0, %s11, %s9
  $region1: #{tpu_custom_call.1} parent=0
    #allocation2 [shape = 'u8[512]{0}', space=vmem, size = 0x400, scoped, tag = 'output window, operand 0, single buffered']
    #allocation3 [shape = 's32[1]{0}', space=sflag, size = 0x4, scoped, tag = 'scoped memory for tpu_custom_call.1']
    %13 = vsyncpa [#allocation3], 0
    // Predicated region
    $region2: #{tpu_custom_call.1} parent=1 // pred_check
      _
    $region3: #{tpu_custom_call.1} parent=1 // pred_check_branch
      %15 = sbr.rel (0) target = $region5
    $region4: #{tpu_custom_call.1} parent=1 // pred_region
      _
    $region5: #{tpu_custom_call.1} parent=1 // pred_fallthru
      _
    // Predicated region
    $region6: #{tpu_custom_call.1} parent=1 // pred_check
      _
    $region7: #{tpu_custom_call.1} parent=1 // pred_check_branch
      %17 = sbr.rel (0) target = $region9
    $region8: #{tpu_custom_call.1} parent=1 // pred_region
      _
    $region9: #{tpu_custom_call.1} parent=1 // pred_fallthru
      _
    // Predicated region
    $region10: #{tpu_custom_call.1} parent=1 // pred_check
      _
    $region11: #{tpu_custom_call.1} parent=1 // pred_check_branch
      %19 = sbr.rel (0) target = $region13
    $region12: #{tpu_custom_call.1} parent=1 // pred_region
      _
    $region13: #{tpu_custom_call.1} parent=1 // pred_fallthru
      _
    // Predicated region
    $region14: #{tpu_custom_call.1} parent=1 // pred_check
      _
    $region15: #{tpu_custom_call.1} parent=1 // pred_check_branch
      %21 = sbr.rel (0) target = $region17
    $region16: #{tpu_custom_call.1} parent=1 // pred_region
      _
    $region17: #{tpu_custom_call.1} parent=1 // pred_fallthru
      _
    // Predicated region
    $region18: #{tpu_custom_call.1} parent=1 // pred_check
      _
    $region19: #{tpu_custom_call.1} parent=1 // pred_check_branch
      %23 = sbr.rel (0) target = $region21
    $region20: #{tpu_custom_call.1} parent=1 // pred_region
      _
    $region21: #{tpu_custom_call.1} parent=1 // pred_fallthru
      _
    // Predicated region
    $region22: #{tpu_custom_call.1} parent=1 // pred_check
      _
    $region23: #{tpu_custom_call.1} parent=1 // pred_check_branch
      %25 = sbr.rel (0) target = $region25
    $region24: #{tpu_custom_call.1} parent=1 // pred_region
      _
    $region25: #{tpu_custom_call.1} parent=1 // pred_fallthru
      _
    // Predicated region
    $region26: #{tpu_custom_call.1} parent=1 // pred_check
      _
    $region27: #{tpu_custom_call.1} parent=1 // pred_check_branch
      %27 = sbr.rel (0) target = $region29
    $region28: #{tpu_custom_call.1} parent=1 // pred_region
      _
    $region29: #{tpu_custom_call.1} parent=1 // pred_fallthru
      _
    // Predicated region
    $region30: #{tpu_custom_call.1} parent=1 // pred_check
      _
    $region31: #{tpu_custom_call.1} parent=1 // pred_check_branch
      %29 = sbr.rel (0) target = $region33
    $region32: #{tpu_custom_call.1} parent=1 // pred_region
      _
    $region33: #{tpu_custom_call.1} parent=1 // pred_fallthru
      _
    %v30 = vld [vmem:[%s0] sm:$0xff]
    %v31 = vld [vmem:[%s1] sm:$0xf]
    %v32 = vld [vmem:[%s2] sm:$0xff]
    %v33 = vld [vmem:[%s2 + $0x8] sm:$0xff]
    %v34 = vld [vmem:[%s2 + $0x10] sm:$0xff]
    %v35 = vld [vmem:[%s2 + $0x18] sm:$0xff]
    %v36 = vld [vmem:[%s2 + $0x20] sm:$0xff]
    %v37 = vld [vmem:[%s2 + $0x28] sm:$0xff]
    %v38 = vld [vmem:[%s2 + $0x30] sm:$0xff]
    %v39 = vld [vmem:[%s2 + $0x38] sm:$0xff]
    %v40 = vld [vmem:[%s2 + $0x40] sm:$0xff]
    %v41 = vld [vmem:[%s2 + $0x48] sm:$0xff]
    %v42 = vld [vmem:[%s2 + $0x50] sm:$0xff]
    %v43 = vld [vmem:[%s2 + $0x58] sm:$0xff]
    %v44 = vld [vmem:[%s2 + $0x60] sm:$0xff]
    %v45 = vld [vmem:[%s2 + $0x68] sm:$0xff]
    %v46 = vld [vmem:[%s2 + $0x70] sm:$0xff]
    %v47 = vld [vmem:[%s2 + $0x78] sm:$0xff]
    %v48 = vld [vmem:[%s3] sm:$0xff]
    %v49 = vld [vmem:[%s3 + $0x8] sm:$0xff]
    %v50 = vld [vmem:[%s3 + $0x10] sm:$0xff]
    %v51 = vld [vmem:[%s3 + $0x18] sm:$0xff]
    %v52 = vld [vmem:[%s3 + $0x20] sm:$0xff]
    %v53 = vld [vmem:[%s3 + $0x28] sm:$0xff]
    %v54 = vld [vmem:[%s3 + $0x30] sm:$0xff]
    %v55 = vld [vmem:[%s3 + $0x38] sm:$0xff]
    %v56 = vld [vmem:[%s3 + $0x40] sm:$0xff]
    %v57 = vld [vmem:[%s3 + $0x48] sm:$0xff]
    %v58 = vld [vmem:[%s3 + $0x50] sm:$0xff]
    %v59 = vld [vmem:[%s3 + $0x58] sm:$0xff]
    %v60 = vld [vmem:[%s3 + $0x60] sm:$0xff]
    %v61 = vld [vmem:[%s3 + $0x68] sm:$0xff]
    %v62 = vld [vmem:[%s3 + $0x70] sm:$0xff]
    %v63 = vld [vmem:[%s3 + $0x78] sm:$0xff]
    %65 = vset.pattern.permute.xlu0 0
    %66 = vperm.xlu0 %65, %v48
    %v67 = vpop.permute.xlu0 %66
    %70 = vset.pattern.permute.xlu0 0
    %71 = vperm.xlu0 %70, %v49
    %v72 = vpop.permute.xlu0 %71
    %75 = vset.pattern.permute.xlu0 0
    %76 = vperm.xlu0 %75, %v50
    %v77 = vpop.permute.xlu0 %76
    %80 = vset.pattern.permute.xlu0 0
    %81 = vperm.xlu0 %80, %v51
    %v82 = vpop.permute.xlu0 %81
    %85 = vset.pattern.permute.xlu0 0
    %86 = vperm.xlu0 %85, %v52
    %v87 = vpop.permute.xlu0 %86
    %90 = vset.pattern.permute.xlu0 0
    %91 = vperm.xlu0 %90, %v53
    %v92 = vpop.permute.xlu0 %91
    %95 = vset.pattern.permute.xlu0 0
    %96 = vperm.xlu0 %95, %v54
    %v97 = vpop.permute.xlu0 %96
    %100 = vset.pattern.permute.xlu0 0
    %101 = vperm.xlu0 %100, %v55
    %v102 = vpop.permute.xlu0 %101
    %105 = vset.pattern.permute.xlu0 0
    %106 = vperm.xlu0 %105, %v56
    %v107 = vpop.permute.xlu0 %106
    %110 = vset.pattern.permute.xlu0 0
    %111 = vperm.xlu0 %110, %v57
    %v112 = vpop.permute.xlu0 %111
    %115 = vset.pattern.permute.xlu0 0
    %116 = vperm.xlu0 %115, %v58
    %v117 = vpop.permute.xlu0 %116
    %120 = vset.pattern.permute.xlu0 0
    %121 = vperm.xlu0 %120, %v59
    %v122 = vpop.permute.xlu0 %121
    %125 = vset.pattern.permute.xlu0 0
    %126 = vperm.xlu0 %125, %v60
    %v127 = vpop.permute.xlu0 %126
    %130 = vset.pattern.permute.xlu0 0
    %131 = vperm.xlu0 %130, %v61
    %v132 = vpop.permute.xlu0 %131
    %135 = vset.pattern.permute.xlu0 0
    %136 = vperm.xlu0 %135, %v62
    %v137 = vpop.permute.xlu0 %136
    %140 = vset.pattern.permute.xlu0 0
    %141 = vperm.xlu0 %140, %v63
    %v142 = vpop.permute.xlu0 %141
    %vm144 = vcmask 64512
    %v146 = vsel %vm144, %v32, 0
    %v149 = vsel %vm144, %v33, 0
    %v152 = vsel %vm144, %v34, 0
    %v155 = vsel %vm144, %v35, 0
    %v158 = vsel %vm144, %v36, 0
    %v161 = vsel %vm144, %v37, 0
    %v164 = vsel %vm144, %v38, 0
    %v167 = vsel %vm144, %v39, 0
    %v170 = vsel %vm144, %v40, 0
    %v173 = vsel %vm144, %v41, 0
    %v176 = vsel %vm144, %v42, 0
    %v179 = vsel %vm144, %v43, 0
    %v182 = vsel %vm144, %v44, 0
    %v185 = vsel %vm144, %v45, 0
    %v188 = vsel %vm144, %v46, 0
    %v191 = vsel %vm144, %v47, 0
    %193 = vmatprep.subr.mxu0 0.0
    %194 = vmatpush1.msra.mxu0 %v30
    %195 = vmatprep.subr.mxu0 0.0
    %196 = vmatpush1.msra.mxu0 0.0
    %197 = vmatprep.subr.mxu0 0.0
    %198 = vmatpush1.msra.mxu0 0.0
    %199 = vmatprep.subr.mxu0 0.0
    %200 = vmatpush1.msra.mxu0 0.0
    %201 = vmatprep.subr.mxu0 0.0
    %202 = vmatpush1.msra.mxu0 0.0
    %203 = vmatprep.subr.mxu0 0.0
    %204 = vmatpush1.msra.mxu0 0.0
    %205 = vmatprep.subr.mxu0 0.0
    %206 = vmatpush1.msra.mxu0 0.0
    %207 = vmatprep.subr.mxu0 0.0
    %208 = vmatpush1.msra.mxu0 0.0
    %209 = vmatprep.subr.mxu0 0.0
    %210 = vmatpush1.msra.mxu0 0.0
    %211 = vmatprep.subr.mxu0 0.0
    %212 = vmatpush1.msra.mxu0 0.0
    %213 = vmatprep.subr.mxu0 0.0
    %214 = vmatpush1.msra.mxu0 0.0
    %215 = vmatprep.subr.mxu0 0.0
    %216 = vmatpush1.msra.mxu0 0.0
    %217 = vmatprep.subr.mxu0 0.0
    %218 = vmatpush1.msra.mxu0 0.0
    %219 = vmatprep.subr.mxu0 0.0
    %220 = vmatpush1.msra.mxu0 0.0
    %221 = vmatprep.subr.mxu0 0.0
    %222 = vmatpush1.msra.mxu0 0.0
    %223 = vmatprep.subr.mxu0 0.0
    %224 = vmatpush1.msra.mxu0 0.0
    %225 = vmatprep.subr.mxu0 0.0
    %226 = vmatpush1.msra.mxu0 0.0
    %227 = vmatprep.subr.mxu0 0.0
    %228 = vmatpush1.msra.mxu0 0.0
    %229 = vmatprep.subr.mxu0 0.0
    %230 = vmatpush1.msra.mxu0 0.0
    %231 = vmatprep.subr.mxu0 0.0
    %232 = vmatpush1.msra.mxu0 0.0
    %233 = vmatprep.subr.mxu0 0.0
    %234 = vmatpush1.msra.mxu0 0.0
    %235 = vmatprep.subr.mxu0 0.0
    %236 = vmatpush1.msra.mxu0 0.0
    %237 = vmatprep.subr.mxu0 0.0
    %238 = vmatpush1.msra.mxu0 0.0
    %239 = vmatprep.subr.mxu0 0.0
    %240 = vmatpush1.msra.mxu0 0.0
    %241 = vmatprep.subr.mxu0 0.0
    %242 = vmatpush1.msra.mxu0 0.0
    %243 = vmatprep.subr.mxu0 0.0
    %244 = vmatpush1.msra.mxu0 0.0
    %245 = vmatprep.subr.mxu0 0.0
    %246 = vmatpush1.msra.mxu0 0.0
    %247 = vmatprep.subr.mxu0 0.0
    %248 = vmatpush1.msra.mxu0 0.0
    %249 = vmatprep.subr.mxu0 0.0
    %250 = vmatpush1.msra.mxu0 0.0
    %251 = vmatprep.subr.mxu0 0.0
    %252 = vmatpush1.msra.mxu0 0.0
    %253 = vmatprep.subr.mxu0 0.0
    %254 = vmatpush1.msra.mxu0 0.0
    %255 = vmatprep.subr.mxu0 0.0
    %256 = vmatpush1.msra.mxu0 0.0
    %257 = vmatprep.mubr.f32.mxu0 0.0
    %258 = vmatmul.mubr.f32.gmra.mrb[0].mxu0 %v146
    %v259 = vpop.f32.mrb[0].mxu0
    %v260 = vadd.f32 %v67, %v259
    %v261 = vpop.f32.mrb[0].mxu0
    %262 = vmatprep.mubr.f32.mxu0 0.0
    %263 = vmatmul.mubr.f32.gmra.mrb[0].mxu0 %v149
    %v264 = vpop.f32.mrb[0].mxu0
    %v265 = vadd.f32 %v72, %v264
    %v266 = vpop.f32.mrb[0].mxu0
    %267 = vmatprep.mubr.f32.mxu0 0.0
    %268 = vmatmul.mubr.f32.gmra.mrb[0].mxu0 %v152
    %v269 = vpop.f32.mrb[0].mxu0
    %v270 = vadd.f32 %v77, %v269
    %v271 = vpop.f32.mrb[0].mxu0
    %272 = vmatprep.mubr.f32.mxu0 0.0
    %273 = vmatmul.mubr.f32.gmra.mrb[0].mxu0 %v155
    %v274 = vpop.f32.mrb[0].mxu0
    %v275 = vadd.f32 %v82, %v274
    %v276 = vpop.f32.mrb[0].mxu0
    %277 = vmatprep.mubr.f32.mxu0 0.0
    %278 = vmatmul.mubr.f32.gmra.mrb[0].mxu0 %v158
    %v279 = vpop.f32.mrb[0].mxu0
    %v280 = vadd.f32 %v87, %v279
    %v281 = vpop.f32.mrb[0].mxu0
    %282 = vmatprep.mubr.f32.mxu0 0.0
    %283 = vmatmul.mubr.f32.gmra.mrb[0].mxu0 %v161
    %v284 = vpop.f32.mrb[0].mxu0
    %v285 = vadd.f32 %v92, %v284
    %v286 = vpop.f32.mrb[0].mxu0
    %287 = vmatprep.mubr.f32.mxu0 0.0
    %288 = vmatmul.mubr.f32.gmra.mrb[0].mxu0 %v164
    %v289 = vpop.f32.mrb[0].mxu0
    %v290 = vadd.f32 %v97, %v289
    %v291 = vpop.f32.mrb[0].mxu0
    %292 = vmatprep.mubr.f32.mxu0 0.0
    %293 = vmatmul.mubr.f32.gmra.mrb[0].mxu0 %v167
    %v294 = vpop.f32.mrb[0].mxu0
    %v295 = vadd.f32 %v102, %v294
    %v296 = vpop.f32.mrb[0].mxu0
    %297 = vmatprep.mubr.f32.mxu0 0.0
    %298 = vmatmul.mubr.f32.gmra.mrb[0].mxu0 %v170
    %v299 = vpop.f32.mrb[0].mxu0
    %v300 = vadd.f32 %v107, %v299
    %v301 = vpop.f32.mrb[0].mxu0
    %302 = vmatprep.mubr.f32.mxu0 0.0
    %303 = vmatmul.mubr.f32.gmra.mrb[0].mxu0 %v173
    %v304 = vpop.f32.mrb[0].mxu0
    %v305 = vadd.f32 %v112, %v304
    %v306 = vpop.f32.mrb[0].mxu0
    %307 = vmatprep.mubr.f32.mxu0 0.0
    %308 = vmatmul.mubr.f32.gmra.mrb[0].mxu0 %v176
    %v309 = vpop.f32.mrb[0].mxu0
    %v310 = vadd.f32 %v117, %v309
    %v311 = vpop.f32.mrb[0].mxu0
    %312 = vmatprep.mubr.f32.mxu0 0.0
    %313 = vmatmul.mubr.f32.gmra.mrb[0].mxu0 %v179
    %v314 = vpop.f32.mrb[0].mxu0
    %v315 = vadd.f32 %v122, %v314
    %v316 = vpop.f32.mrb[0].mxu0
    %317 = vmatprep.mubr.f32.mxu0 0.0
    %318 = vmatmul.mubr.f32.gmra.mrb[0].mxu0 %v182
    %v319 = vpop.f32.mrb[0].mxu0
    %v320 = vadd.f32 %v127, %v319
    %v321 = vpop.f32.mrb[0].mxu0
    %322 = vmatprep.mubr.f32.mxu0 0.0
    %323 = vmatmul.mubr.f32.gmra.mrb[0].mxu0 %v185
    %v324 = vpop.f32.mrb[0].mxu0
    %v325 = vadd.f32 %v132, %v324
    %v326 = vpop.f32.mrb[0].mxu0
    %327 = vmatprep.mubr.f32.mxu0 0.0
    %328 = vmatmul.mubr.f32.gmra.mrb[0].mxu0 %v188
    %v329 = vpop.f32.mrb[0].mxu0
    %v330 = vadd.f32 %v137, %v329
    %v331 = vpop.f32.mrb[0].mxu0
    %332 = vmatprep.mubr.f32.mxu0 0.0
    %333 = vmatmul.mubr.f32.gmra.mrb[0].mxu0 %v191
    %v334 = vpop.f32.mrb[0].mxu0
    %v335 = vadd.f32 %v142, %v334
    %v336 = vpop.f32.mrb[0].mxu0
    %337 = vdwg.mxu0
    %v338 = vmax.f32 %v260, 0.0
    %v339 = vmax.f32 %v265, 0.0
    %v340 = vmax.f32 %v270, 0.0
    %v341 = vmax.f32 %v275, 0.0
    %v342 = vmax.f32 %v280, 0.0
    %v343 = vmax.f32 %v285, 0.0
    %v344 = vmax.f32 %v290, 0.0
    %v345 = vmax.f32 %v295, 0.0
    %v346 = vmax.f32 %v300, 0.0
    %v347 = vmax.f32 %v305, 0.0
    %v348 = vmax.f32 %v310, 0.0
    %v349 = vmax.f32 %v315, 0.0
    %v350 = vld [vmem:[%s4] sm:$0xff]
    %v351 = vld [vmem:[%s4 + $0x8] sm:$0xff]
    %v352 = vld [vmem:[%s4 + $0x10] sm:$0xff]
    %v353 = vld [vmem:[%s4 + $0x18] sm:$0xff]
    %v354 = vld [vmem:[%s4 + $0x20] sm:$0xff]
    %v355 = vld [vmem:[%s4 + $0x28] sm:$0xff]
    %v356 = vld [vmem:[%s4 + $0x30] sm:$0xff]
    %v357 = vld [vmem:[%s4 + $0x38] sm:$0xff]
    %v358 = vld [vmem:[%s4 + $0x40] sm:$0xff]
    %v359 = vld [vmem:[%s4 + $0x48] sm:$0xff]
    %v360 = vld [vmem:[%s4 + $0x50] sm:$0xff]
    %v361 = vld [vmem:[%s4 + $0x58] sm:$0xff]
    %v362 = vld [vmem:[%s4 + $0x60] sm:$0xff]
    %v363 = vld [vmem:[%s4 + $0x68] sm:$0xff]
    %v364 = vld [vmem:[%s4 + $0x70] sm:$0xff]
    %v365 = vld [vmem:[%s4 + $0x78] sm:$0xff]
    %v366 = vld [vmem:[%s5] sm:$0xff]
    %v367 = vld [vmem:[%s5 + $0x8] sm:$0xff]
    %v368 = vld [vmem:[%s5 + $0x10] sm:$0xff]
    %v369 = vld [vmem:[%s5 + $0x18] sm:$0xff]
    %v370 = vld [vmem:[%s5 + $0x20] sm:$0xff]
    %v371 = vld [vmem:[%s5 + $0x28] sm:$0xff]
    %v372 = vld [vmem:[%s5 + $0x30] sm:$0xff]
    %v373 = vld [vmem:[%s5 + $0x38] sm:$0xff]
    %v374 = vld [vmem:[%s5 + $0x40] sm:$0xff]
    %v375 = vld [vmem:[%s5 + $0x48] sm:$0xff]
    %v376 = vld [vmem:[%s5 + $0x50] sm:$0xff]
    %v377 = vld [vmem:[%s5 + $0x58] sm:$0xff]
    %v378 = vld [vmem:[%s5 + $0x60] sm:$0xff]
    %v379 = vld [vmem:[%s5 + $0x68] sm:$0xff]
    %v380 = vld [vmem:[%s5 + $0x70] sm:$0xff]
    %v381 = vld [vmem:[%s5 + $0x78] sm:$0xff]
    %383 = vset.pattern.permute.xlu0 0
    %384 = vperm.xlu0 %383, %v366
    %v385 = vpop.permute.xlu0 %384
    %388 = vset.pattern.permute.xlu0 0
    %389 = vperm.xlu0 %388, %v367
    %v390 = vpop.permute.xlu0 %389
    %393 = vset.pattern.permute.xlu0 0
    %394 = vperm.xlu0 %393, %v368
    %v395 = vpop.permute.xlu0 %394
    %398 = vset.pattern.permute.xlu0 0
    %399 = vperm.xlu0 %398, %v369
    %v400 = vpop.permute.xlu0 %399
    %403 = vset.pattern.permute.xlu0 0
    %404 = vperm.xlu0 %403, %v370
    %v405 = vpop.permute.xlu0 %404
    %408 = vset.pattern.permute.xlu0 0
    %409 = vperm.xlu0 %408, %v371
    %v410 = vpop.permute.xlu0 %409
    %413 = vset.pattern.permute.xlu0 0
    %414 = vperm.xlu0 %413, %v372
    %v415 = vpop.permute.xlu0 %414
    %418 = vset.pattern.permute.xlu0 0
    %419 = vperm.xlu0 %418, %v373
    %v420 = vpop.permute.xlu0 %419
    %423 = vset.pattern.permute.xlu0 0
    %424 = vperm.xlu0 %423, %v374
    %v425 = vpop.permute.xlu0 %424
    %428 = vset.pattern.permute.xlu0 0
    %429 = vperm.xlu0 %428, %v375
    %v430 = vpop.permute.xlu0 %429
    %433 = vset.pattern.permute.xlu0 0
    %434 = vperm.xlu0 %433, %v376
    %v435 = vpop.permute.xlu0 %434
    %438 = vset.pattern.permute.xlu0 0
    %439 = vperm.xlu0 %438, %v377
    %v440 = vpop.permute.xlu0 %439
    %443 = vset.pattern.permute.xlu0 0
    %444 = vperm.xlu0 %443, %v378
    %v445 = vpop.permute.xlu0 %444
    %448 = vset.pattern.permute.xlu0 0
    %449 = vperm.xlu0 %448, %v379
    %v450 = vpop.permute.xlu0 %449
    %453 = vset.pattern.permute.xlu0 0
    %454 = vperm.xlu0 %453, %v380
    %v455 = vpop.permute.xlu0 %454
    %458 = vset.pattern.permute.xlu0 0
    %459 = vperm.xlu0 %458, %v381
    %v460 = vpop.permute.xlu0 %459
    %vm462 = vcmask 261120
    %v464 = vsel %vm462, %v350, 0
    %v467 = vsel %vm462, %v351, 0
    %v470 = vsel %vm462, %v352, 0
    %v473 = vsel %vm462, %v353, 0
    %v476 = vsel %vm462, %v354, 0
    %v479 = vsel %vm462, %v355, 0
    %v482 = vsel %vm462, %v356, 0
    %v485 = vsel %vm462, %v357, 0
    %v488 = vsel %vm462, %v358, 0
    %v491 = vsel %vm462, %v359, 0
    %v494 = vsel %vm462, %v360, 0
    %v497 = vsel %vm462, %v361, 0
    %v500 = vsel %vm462, %v362, 0
    %v503 = vsel %vm462, %v363, 0
    %v506 = vsel %vm462, %v364, 0
    %v509 = vsel %vm462, %v365, 0
    %511 = vmatprep.subr.mxu0 0.0
    %512 = vmatpush1.msra.mxu0 %v338
    %513 = vmatprep.subr.mxu0 0.0
    %514 = vmatpush1.msra.mxu0 %v339
    %515 = vmatprep.subr.mxu0 0.0
    %516 = vmatpush1.msra.mxu0 %v340
    %517 = vmatprep.subr.mxu0 0.0
    %518 = vmatpush1.msra.mxu0 %v341
    %519 = vmatprep.subr.mxu0 0.0
    %520 = vmatpush1.msra.mxu0 0.0
    %521 = vmatprep.subr.mxu0 0.0
    %522 = vmatpush1.msra.mxu0 0.0
    %523 = vmatprep.subr.mxu0 0.0
    %524 = vmatpush1.msra.mxu0 0.0
    %525 = vmatprep.subr.mxu0 0.0
    %526 = vmatpush1.msra.mxu0 0.0
    %527 = vmatprep.subr.mxu0 0.0
    %528 = vmatpush1.msra.mxu0 0.0
    %529 = vmatprep.subr.mxu0 0.0
    %530 = vmatpush1.msra.mxu0 0.0
    %531 = vmatprep.subr.mxu0 0.0
    %532 = vmatpush1.msra.mxu0 0.0
    %533 = vmatprep.subr.mxu0 0.0
    %534 = vmatpush1.msra.mxu0 0.0
    %535 = vmatprep.subr.mxu0 0.0
    %536 = vmatpush1.msra.mxu0 0.0
    %537 = vmatprep.subr.mxu0 0.0
    %538 = vmatpush1.msra.mxu0 0.0
    %539 = vmatprep.subr.mxu0 0.0
    %540 = vmatpush1.msra.mxu0 0.0
    %541 = vmatprep.subr.mxu0 0.0
    %542 = vmatpush1.msra.mxu0 0.0
    %543 = vmatprep.subr.mxu0 0.0
    %544 = vmatpush1.msra.mxu0 0.0
    %545 = vmatprep.subr.mxu0 0.0
    %546 = vmatpush1.msra.mxu0 0.0
    %547 = vmatprep.subr.mxu0 0.0
    %548 = vmatpush1.msra.mxu0 0.0
    %549 = vmatprep.subr.mxu0 0.0
    %550 = vmatpush1.msra.mxu0 0.0
    %551 = vmatprep.subr.mxu0 0.0
    %552 = vmatpush1.msra.mxu0 0.0
    %553 = vmatprep.subr.mxu0 0.0
    %554 = vmatpush1.msra.mxu0 0.0
    %555 = vmatprep.subr.mxu0 0.0
    %556 = vmatpush1.msra.mxu0 0.0
    %557 = vmatprep.subr.mxu0 0.0
    %558 = vmatpush1.msra.mxu0 0.0
    %559 = vmatprep.subr.mxu0 0.0
    %560 = vmatpush1.msra.mxu0 0.0
    %561 = vmatprep.subr.mxu0 0.0
    %562 = vmatpush1.msra.mxu0 0.0
    %563 = vmatprep.subr.mxu0 0.0
    %564 = vmatpush1.msra.mxu0 0.0
    %565 = vmatprep.subr.mxu0 0.0
    %566 = vmatpush1.msra.mxu0 0.0
    %567 = vmatprep.subr.mxu0 0.0
    %568 = vmatpush1.msra.mxu0 0.0
    %569 = vmatprep.subr.mxu0 0.0
    %570 = vmatpush1.msra.mxu0 0.0
    %571 = vmatprep.subr.mxu0 0.0
    %572 = vmatpush1.msra.mxu0 0.0
    %573 = vmatprep.subr.mxu0 0.0
    %574 = vmatpush1.msra.mxu0 0.0
    %575 = vmatprep.mubr.f32.mxu0 0.0
    %576 = vmatmul.mubr.f32.gmra.mrb[0].mxu0 %v464
    %v577 = vpop.f32.mrb[0].mxu0
    %v578 = vadd.f32 %v385, %v577
    %v579 = vpop.f32.mrb[0].mxu0
    %580 = vmatprep.mubr.f32.mxu0 0.0
    %581 = vmatmul.mubr.f32.gmra.mrb[0].mxu0 %v467
    %v582 = vpop.f32.mrb[0].mxu0
    %v583 = vadd.f32 %v390, %v582
    %v584 = vpop.f32.mrb[0].mxu0
    %585 = vmatprep.mubr.f32.mxu0 0.0
    %586 = vmatmul.mubr.f32.gmra.mrb[0].mxu0 %v470
    %v587 = vpop.f32.mrb[0].mxu0
    %v588 = vadd.f32 %v395, %v587
    %v589 = vpop.f32.mrb[0].mxu0
    %590 = vmatprep.mubr.f32.mxu0 0.0
    %591 = vmatmul.mubr.f32.gmra.mrb[0].mxu0 %v473
    %v592 = vpop.f32.mrb[0].mxu0
    %v593 = vadd.f32 %v400, %v592
    %v594 = vpop.f32.mrb[0].mxu0
    %595 = vmatprep.mubr.f32.mxu0 0.0
    %596 = vmatmul.mubr.f32.gmra.mrb[0].mxu0 %v476
    %v597 = vpop.f32.mrb[0].mxu0
    %v598 = vadd.f32 %v405, %v597
    %v599 = vpop.f32.mrb[0].mxu0
    %600 = vmatprep.mubr.f32.mxu0 0.0
    %601 = vmatmul.mubr.f32.gmra.mrb[0].mxu0 %v479
    %v602 = vpop.f32.mrb[0].mxu0
    %v603 = vadd.f32 %v410, %v602
    %v604 = vpop.f32.mrb[0].mxu0
    %605 = vmatprep.mubr.f32.mxu0 0.0
    %606 = vmatmul.mubr.f32.gmra.mrb[0].mxu0 %v482
    %v607 = vpop.f32.mrb[0].mxu0
    %v608 = vadd.f32 %v415, %v607
    %v609 = vpop.f32.mrb[0].mxu0
    %610 = vmatprep.mubr.f32.mxu0 0.0
    %611 = vmatmul.mubr.f32.gmra.mrb[0].mxu0 %v485
    %v612 = vpop.f32.mrb[0].mxu0
    %v613 = vadd.f32 %v420, %v612
    %v614 = vpop.f32.mrb[0].mxu0
    %615 = vmatprep.mubr.f32.mxu0 0.0
    %616 = vmatmul.mubr.f32.gmra.mrb[0].mxu0 %v488
    %v617 = vpop.f32.mrb[0].mxu0
    %v618 = vadd.f32 %v425, %v617
    %v619 = vpop.f32.mrb[0].mxu0
    %620 = vmatprep.mubr.f32.mxu0 0.0
    %621 = vmatmul.mubr.f32.gmra.mrb[0].mxu0 %v491
    %v622 = vpop.f32.mrb[0].mxu0
    %v623 = vadd.f32 %v430, %v622
    %v624 = vpop.f32.mrb[0].mxu0
    %625 = vmatprep.mubr.f32.mxu0 0.0
    %626 = vmatmul.mubr.f32.gmra.mrb[0].mxu0 %v494
    %v627 = vpop.f32.mrb[0].mxu0
    %v628 = vadd.f32 %v435, %v627
    %v629 = vpop.f32.mrb[0].mxu0
    %630 = vmatprep.mubr.f32.mxu0 0.0
    %631 = vmatmul.mubr.f32.gmra.mrb[0].mxu0 %v497
    %v632 = vpop.f32.mrb[0].mxu0
    %v633 = vadd.f32 %v440, %v632
    %v634 = vpop.f32.mrb[0].mxu0
    %635 = vmatprep.mubr.f32.mxu0 0.0
    %636 = vmatmul.mubr.f32.gmra.mrb[0].mxu0 %v500
    %v637 = vpop.f32.mrb[0].mxu0
    %v638 = vadd.f32 %v445, %v637
    %v639 = vpop.f32.mrb[0].mxu0
    %640 = vmatprep.mubr.f32.mxu0 0.0
    %641 = vmatmul.mubr.f32.gmra.mrb[0].mxu0 %v503
    %v642 = vpop.f32.mrb[0].mxu0
    %v643 = vadd.f32 %v450, %v642
    %v644 = vpop.f32.mrb[0].mxu0
    %645 = vmatprep.mubr.f32.mxu0 0.0
    %646 = vmatmul.mubr.f32.gmra.mrb[0].mxu0 %v506
    %v647 = vpop.f32.mrb[0].mxu0
    %v648 = vadd.f32 %v455, %v647
    %v649 = vpop.f32.mrb[0].mxu0
    %650 = vmatprep.mubr.f32.mxu0 0.0
    %651 = vmatmul.mubr.f32.gmra.mrb[0].mxu0 %v509
    %v652 = vpop.f32.mrb[0].mxu0
    %v653 = vadd.f32 %v460, %v652
    %v654 = vpop.f32.mrb[0].mxu0
    %655 = vdwg.mxu0
    %v656 = vand.u32 2147483647, %v578
    %v657 = vand.u32 2147483647, %v583
    %v658 = vand.u32 2147483647, %v588
    %v659 = vand.u32 2147483647, %v593
    %v660 = vand.u32 2147483647, %v598
    %v661 = vand.u32 2147483647, %v603
    %v662 = vand.u32 2147483647, %v608
    %v663 = vand.u32 2147483647, %v613
    %v664 = vand.u32 2147483647, %v618
    %v665 = vand.u32 2147483647, %v623
    %v666 = vand.u32 2147483647, %v628
    %v667 = vand.u32 2147483647, %v633
    %v668 = vand.u32 2147483647, %v638
    %v669 = vand.u32 2147483647, %v643
    %v670 = vand.u32 2147483647, %v648
    %v671 = vand.u32 2147483647, %v653
    %v672 = vld [vmem:[%s6] sm:$0xff]
    %v673 = vld [vmem:[%s6 + $0x8] sm:$0xff]
    %v674 = vld [vmem:[%s6 + $0x10] sm:$0xff]
    %v675 = vld [vmem:[%s6 + $0x18] sm:$0xff]
    %v676 = vld [vmem:[%s6 + $0x20] sm:$0xff]
    %v677 = vld [vmem:[%s7] sm:$0xff]
    %v678 = vld [vmem:[%s7 + $0x8] sm:$0xff]
    %v679 = vld [vmem:[%s7 + $0x10] sm:$0xff]
    %v680 = vld [vmem:[%s7 + $0x18] sm:$0xff]
    %v681 = vld [vmem:[%s7 + $0x20] sm:$0xff]
    %683 = vset.pattern.permute.xlu0 0
    %684 = vperm.xlu0 %683, %v677
    %v685 = vpop.permute.xlu0 %684
    %688 = vset.pattern.permute.xlu0 0
    %689 = vperm.xlu0 %688, %v678
    %v690 = vpop.permute.xlu0 %689
    %693 = vset.pattern.permute.xlu0 0
    %694 = vperm.xlu0 %693, %v679
    %v695 = vpop.permute.xlu0 %694
    %698 = vset.pattern.permute.xlu0 0
    %699 = vperm.xlu0 %698, %v680
    %v700 = vpop.permute.xlu0 %699
    %703 = vset.pattern.permute.xlu0 0
    %704 = vperm.xlu0 %703, %v681
    %v705 = vpop.permute.xlu0 %704
    %vm707 = vcmask 523264
    %v709 = vsel %vm707, %v672, 0
    %v712 = vsel %vm707, %v673, 0
    %v715 = vsel %vm707, %v674, 0
    %v718 = vsel %vm707, %v675, 0
    %v721 = vsel %vm707, %v676, 0
    %723 = vmatprep.subr.mxu0 0.0
    %724 = vmatpush1.msra.mxu0 %v342
    %725 = vmatprep.subr.mxu0 0.0
    %726 = vmatpush1.msra.mxu0 %v343
    %727 = vmatprep.subr.mxu0 0.0
    %728 = vmatpush1.msra.mxu0 %v344
    %729 = vmatprep.subr.mxu0 0.0
    %730 = vmatpush1.msra.mxu0 %v345
    %731 = vmatprep.subr.mxu0 0.0
    %732 = vmatpush1.msra.mxu0 %v346
    %733 = vmatprep.subr.mxu0 0.0
    %734 = vmatpush1.msra.mxu0 %v347
    %735 = vmatprep.subr.mxu0 0.0
    %736 = vmatpush1.msra.mxu0 %v348
    %737 = vmatprep.subr.mxu0 0.0
    %738 = vmatpush1.msra.mxu0 %v349
    %739 = vmatprep.subr.mxu0 0.0
    %740 = vmatpush1.msra.mxu0 0.0
    %741 = vmatprep.subr.mxu0 0.0
    %742 = vmatpush1.msra.mxu0 0.0
    %743 = vmatprep.subr.mxu0 0.0
    %744 = vmatpush1.msra.mxu0 0.0
    %745 = vmatprep.subr.mxu0 0.0
    %746 = vmatpush1.msra.mxu0 0.0
    %747 = vmatprep.subr.mxu0 0.0
    %748 = vmatpush1.msra.mxu0 0.0
    %749 = vmatprep.subr.mxu0 0.0
    %750 = vmatpush1.msra.mxu0 0.0
    %751 = vmatprep.subr.mxu0 0.0
    %752 = vmatpush1.msra.mxu0 0.0
    %753 = vmatprep.subr.mxu0 0.0
    %754 = vmatpush1.msra.mxu0 0.0
    %755 = vmatprep.subr.mxu0 0.0
    %756 = vmatpush1.msra.mxu0 0.0
    %757 = vmatprep.subr.mxu0 0.0
    %758 = vmatpush1.msra.mxu0 0.0
    %759 = vmatprep.subr.mxu0 0.0
    %760 = vmatpush1.msra.mxu0 0.0
    %761 = vmatprep.subr.mxu0 0.0
    %762 = vmatpush1.msra.mxu0 0.0
    %763 = vmatprep.subr.mxu0 0.0
    %764 = vmatpush1.msra.mxu0 0.0
    %765 = vmatprep.subr.mxu0 0.0
    %766 = vmatpush1.msra.mxu0 0.0
    %767 = vmatprep.subr.mxu0 0.0
    %768 = vmatpush1.msra.mxu0 0.0
    %769 = vmatprep.subr.mxu0 0.0
    %770 = vmatpush1.msra.mxu0 0.0
    %771 = vmatprep.subr.mxu0 0.0
    %772 = vmatpush1.msra.mxu0 0.0
    %773 = vmatprep.subr.mxu0 0.0
    %774 = vmatpush1.msra.mxu0 0.0
    %775 = vmatprep.subr.mxu0 0.0
    %776 = vmatpush1.msra.mxu0 0.0
    %777 = vmatprep.subr.mxu0 0.0
    %778 = vmatpush1.msra.mxu0 0.0
    %779 = vmatprep.subr.mxu0 0.0
    %780 = vmatpush1.msra.mxu0 0.0
    %781 = vmatprep.subr.mxu0 0.0
    %782 = vmatpush1.msra.mxu0 0.0
    %783 = vmatprep.subr.mxu0 0.0
    %784 = vmatpush1.msra.mxu0 0.0
    %785 = vmatprep.subr.mxu0 0.0
    %786 = vmatpush1.msra.mxu0 0.0
    %787 = vmatprep.mubr.f32.mxu0 0.0
    %788 = vmatmul.mubr.f32.gmra.mrb[0].mxu0 %v709
    %v789 = vpop.f32.mrb[0].mxu0
    %v790 = vadd.f32 %v685, %v789
    %v791 = vpop.f32.mrb[0].mxu0
    %792 = vmatprep.mubr.f32.mxu0 0.0
    %793 = vmatmul.mubr.f32.gmra.mrb[0].mxu0 %v712
    %v794 = vpop.f32.mrb[0].mxu0
    %v795 = vadd.f32 %v690, %v794
    %v796 = vpop.f32.mrb[0].mxu0
    %797 = vmatprep.mubr.f32.mxu0 0.0
    %798 = vmatmul.mubr.f32.gmra.mrb[0].mxu0 %v715
    %v799 = vpop.f32.mrb[0].mxu0
    %v800 = vadd.f32 %v695, %v799
    %v801 = vpop.f32.mrb[0].mxu0
    %802 = vmatprep.mubr.f32.mxu0 0.0
    %803 = vmatmul.mubr.f32.gmra.mrb[0].mxu0 %v718
    %v804 = vpop.f32.mrb[0].mxu0
    %v805 = vadd.f32 %v700, %v804
    %v806 = vpop.f32.mrb[0].mxu0
    %807 = vmatprep.mubr.f32.mxu0 0.0
    %808 = vmatmul.mubr.f32.gmra.mrb[0].mxu0 %v721
    %v809 = vpop.f32.mrb[0].mxu0
    %v810 = vadd.f32 %v705, %v809
    %v811 = vpop.f32.mrb[0].mxu0
    %812 = vdwg.mxu0
    %v813 = vand.u32 2147483647, %v790
    %v814 = vand.u32 2147483647, %v795
    %v815 = vand.u32 2147483647, %v800
    %v816 = vand.u32 2147483647, %v805
    %v817 = vlaneseq
    %v818 = vshrl.u32 %v817, 7
    %v819 = vsub.s32 0, %v818
    %v820 = vrot.slane %v31, %v819
    %v821 = vmul.f32 %v820, %v656
    %v822 = vmul.f32 %v820, %v657
    %v823 = vmul.f32 %v820, %v658
    %v824 = vmul.f32 %v820, %v659
    %v825 = vadd.f32 %v320, %v821
    %v826 = vadd.f32 %v325, %v822
    %v827 = vadd.f32 %v330, %v823
    %v828 = vadd.f32 %v335, %v824
    %v829 = vlaneseq
    %v830 = vshrl.u32 %v829, 7
    %v831 = vsub.s32 1, %v830
    %v832 = vrot.slane %v31, %v831
    %v833 = vmul.f32 %v832, %v660
    %v834 = vmul.f32 %v832, %v661
    %v835 = vmul.f32 %v832, %v662
    %v836 = vmul.f32 %v832, %v663
    %v837 = vadd.f32 %v825, %v833
    %v838 = vadd.f32 %v826, %v834
    %v839 = vadd.f32 %v827, %v835
    %v840 = vadd.f32 %v828, %v836
    %v841 = vlaneseq
    %v842 = vshrl.u32 %v841, 7
    %v843 = vsub.s32 2, %v842
    %v844 = vrot.slane %v31, %v843
    %v845 = vmul.f32 %v844, %v664
    %v846 = vmul.f32 %v844, %v665
    %v847 = vmul.f32 %v844, %v666
    %v848 = vmul.f32 %v844, %v667
    %v849 = vadd.f32 %v837, %v845
    %v850 = vadd.f32 %v838, %v846
    %v851 = vadd.f32 %v839, %v847
    %v852 = vadd.f32 %v840, %v848
    %v853 = vlaneseq
    %v854 = vshrl.u32 %v853, 7
    %v855 = vsub.s32 3, %v854
    %v856 = vrot.slane %v31, %v855
    %v857 = vmul.f32 %v856, %v668
    %v858 = vmul.f32 %v856, %v669
    %v859 = vmul.f32 %v856, %v670
    %v860 = vmul.f32 %v856, %v671
    %v861 = vadd.f32 %v849, %v857
    %v862 = vadd.f32 %v850, %v858
    %v863 = vadd.f32 %v851, %v859
    %v864 = vadd.f32 %v852, %v860
    %vm865 = vcmp.gt.f32.partialorder %v861, 0.0
    %vm866 = vcmp.gt.f32.partialorder %v862, 0.0
    %vm867 = vcmp.gt.f32.partialorder %v863, 0.0
    %vm868 = vcmp.gt.f32.partialorder %v864, 0.0
    %v869 = vmin.f32 %v861, 0.0
    %v870 = vmin.f32 %v862, 0.0
    %v871 = vmin.f32 %v863, 0.0
    %v872 = vmin.f32 %v864, 0.0
    %v873 = vmul.f32 %v869, 1.442695
    %v874 = vpow.pop %v873
    %v875 = vmul.f32 %v870, 1.442695
    %v876 = vpow.pop %v875
    %v877 = vmul.f32 %v871, 1.442695
    %v878 = vpow.pop %v877
    %v879 = vmul.f32 %v872, 1.442695
    %v880 = vpow.pop %v879
    %v881 = vsub.f32 %v874, 1.0
    %v882 = vsub.f32 %v876, 1.0
    %v883 = vsub.f32 %v878, 1.0
    %v884 = vsub.f32 %v880, 1.0
    %v885 = vsel %vm865, %v861, %v881
    %v886 = vsel %vm866, %v862, %v882
    %v887 = vsel %vm867, %v863, %v883
    %v888 = vsel %vm868, %v864, %v884
    %v889 = vmul.f32 %v885, %v813
    %v890 = vmul.f32 %v886, %v814
    %v891 = vmul.f32 %v887, %v815
    %v892 = vmul.f32 %v888, %v816
    %v893 = vadd.f32 %v889, %v890
    %v894 = vadd.f32 %v893, %v891
    %v895 = vadd.f32 %v894, %v892
    %v896 = vrot.slane %v895, 4
    %v897 = vadd.f32 %v895, %v896
    %v898 = vrot.slane %v897, 2
    %v899 = vadd.f32 %v897, %v898
    %v900 = vrot.slane %v899, 1
    %v901 = vadd.f32 %v899, %v900
    %v902 = vadd.f32 %v901, %v810
    %903 = vst [vmem:[#allocation2] sm:$0x1] %v902
    // Predicated region
    $region34: #{tpu_custom_call.1} parent=1 // pred_check
      _
    $region35: #{tpu_custom_call.1} parent=1 // pred_check_branch
      %905 = sbr.rel (0) target = $region37
    $region36: #{tpu_custom_call.1} parent=1 // pred_region
      %s907 = ssub.s32 16, 16
      %908 = vsyncadd [#allocation3], %s907
      %s910 = sshll.u32 [#allocation2], 4
      %s911 = int_to_ptr.vmem [resolvable:$true] %s910
      %913 = dma.vmem_to_hbm [thread:$0]  %s911, 16, %s8, [#allocation3]
    $region37: #{tpu_custom_call.1} parent=1 // pred_fallthru
      _
    // Predicated region
    $region38: #{tpu_custom_call.1} parent=1 // pred_check
      _
    $region39: #{tpu_custom_call.1} parent=1 // pred_check_branch
      %915 = sbr.rel (0) target = $region41
    $region40: #{tpu_custom_call.1} parent=1 // pred_region
      %916 = dma.done [#allocation3], 16
    $region41: #{tpu_custom_call.1} parent=1 // pred_fallthru
      _
    %917 = vsyncpa [#allocation3], 1

</llo_original>
